<compile_context>
chip_gen: v6e
topology: v6e:2x2x1
jax: 0.10.0
libtpu: 0.0.40
codegen_flags: <defaults>
</compile_context>

<pallas_src>
import jax
import jax.numpy as jnp
from jax import lax
from jax.experimental import pallas as pl
from jax.experimental.pallas import tpu as pltpu

L_TP = 16            # L_tp in the PyTorch module
M_DIM = 32           # M in the PyTorch module (feature size of h_1 / h_2)
TILE_N_DEFAULT = 8192  # rows of flattened (B*T) processed per grid step


def topo_attention_kernel(h1_ref, h2_ref, v_ref, w_ref, out_ref):
    # h1_ref/h2_ref: (TILE_N, M)   v_ref: (L, M) == V_tp
    # w_ref: (L, 1) == w_tp.T (f32)    out_ref: (2, TILE_N)  lane-dense output
    v = v_ref[...]
    w = w_ref[...]                       # (L, 1), float32

    def branch_score(h):
        # (L, M) contracted with (TILE_N, M) over M -> (L, TILE_N); lane-dense
        # so the tanh (EUP) and the w-reduce touch only live lanes.
        t = jnp.tanh(lax.dot_general(
            v, h,
            dimension_numbers=(((1,), (1,)), ((), ())),
            preferred_element_type=jnp.float32))
        # w_tp @ tanh(...) as broadcast-multiply + sublane (XLU) reduce.
        return jnp.sum(w * t, axis=0, keepdims=True)   # (1, TILE_N) f32

    s1 = branch_score(h1_ref[...])
    s2 = branch_score(h2_ref[...])

    # 2-way softmax over the branch axis == sigmoid(s1 - s2), single stable exp.
    d = s1 - s2
    e = jnp.exp(-jnp.abs(d))
    p_hi = 1.0 / (1.0 + e)                       # prob of larger-score branch
    p1 = jnp.where(d >= 0.0, p_hi, 1.0 - p_hi)

    out_ref[0:1, :] = p1
    out_ref[1:2, :] = 1.0 - p1


def topo_attention(h1, h2, w_tp, V_tp, *, tile_n=None):
    """h1, h2: (B, T, M).  Returns (B, 2, T) == torch.permute(A, (2, 1, 0))."""
    B, T, Mdim = h1.shape
    N = B * T

    # Free, copy-less views (row-major contiguous reshape); no dtype up-cast
    # here [R7] -- the big inputs are streamed in whatever float dtype the
    # caller provides (bf16 halves HBM read traffic).
    h1f = h1.reshape(N, Mdim)
    h2f = h2.reshape(N, Mdim)
    v = V_tp.astype(h1f.dtype)           # (L, M), tiny, must match h for MXU
    w = w_tp.T.astype(jnp.float32)       # (L, 1), tiny, elementwise only
    Ldim = v.shape[0]

    if tile_n is None:
        # Single exact block for small problems (no padding / masking at all);
        # large, lane-aligned tile for big problems.  8192 keeps the
        # double-buffered working set ~16.5 MiB -> fits v7x's 64 MiB VMEM with
        # plenty of headroom [R2][R3].
        tile_n = N if N <= TILE_N_DEFAULT else TILE_N_DEFAULT

    grid = (pl.cdiv(N, tile_n),)         # ragged edge block is masked [R1]

    out2n = pl.pallas_call(
        topo_attention_kernel,
        out_shape=jax.ShapeDtypeStruct((2, N), jnp.float32),
        grid=grid,
        in_specs=[
            pl.BlockSpec((tile_n, Mdim), lambda i: (i, 0)),
            pl.BlockSpec((tile_n, Mdim), lambda i: (i, 0)),
            pl.BlockSpec((Ldim, Mdim), lambda i: (0, 0)),   # V_tp, resident
            pl.BlockSpec((Ldim, 1), lambda i: (0, 0)),      # w_tp.T, resident
        ],
        out_specs=pl.BlockSpec((2, tile_n), lambda i: (0, i)),
        compiler_params=pltpu.CompilerParams(
            dimension_semantics=("parallel",),
            vmem_limit_bytes=32 * 1024 * 1024,
        ),
    )(h1f, h2f, v, w)

    # (2, N) -> (2, B, T) -> (B, 2, T).  Small (8 B/row vs 256 B/row of input);
    # consumers happy with (2, B, T) can use out2n.reshape(2, B, T) copy-free.
    return out2n.reshape(2, B, T).transpose(1, 0, 2)


def topo_attention_reference(h1, h2, w_tp, V_tp):
    """Pure-JAX reference mirroring the PyTorch loop."""
    t1 = jnp.tanh(jnp.einsum("lm,btm->btl", V_tp, h1))
    t2 = jnp.tanh(jnp.einsum("lm,btm->btl", V_tp, h2))
    s1 = jnp.einsum("l,btl->bt", w_tp[0], t1)
    s2 = jnp.einsum("l,btl->bt", w_tp[0], t2)
    s = jnp.stack([s1, s2], axis=1)          # (B, 2, T)
    return jax.nn.softmax(s, axis=1)


if __name__ == "__main__":
    key = jax.random.PRNGKey(0)
    kw, kv, kh1, kh2, kh3, kh4 = jax.random.split(key, 6)

    # nn.init.trunc_normal_(mean=-0.1, std=0.1) equivalents (deterministic).
    w_tp = -0.1 + 0.1 * jax.random.truncated_normal(
        kw, -2.0, 2.0, (1, L_TP), jnp.float32)
    V_tp = -0.1 + 0.1 * jax.random.truncated_normal(
        kv, -2.0, 2.0, (L_TP, M_DIM), jnp.float32)

    # --- small canonical case: B=2, T=8 (single exact block, no masking) ---
    B, T = 2, 8
    h1 = jax.random.normal(kh1, (B, T, M_DIM), jnp.float32)
    h2 = jax.random.normal(kh2, (B, T, M_DIM), jnp.float32)

    out = jax.block_until_ready(topo_attention(h1, h2, w_tp, V_tp))
    ref = topo_attention_reference(h1, h2, w_tp, V_tp)
    assert out.shape == (B, 2, T), out.shape
    assert jnp.allclose(out, ref, atol=1e-4, rtol=1e-4), (
        float(jnp.max(jnp.abs(out - ref))))

    # --- ragged multi-tile case: exercises the cdiv grid + masked edge block
    #     (the production path for N > TILE_N, scaled down via tile_n=128) ---
    B2, T2 = 3, 100                      # N = 300, tile_n = 128 -> grid = 3
    h1b = jax.random.normal(kh3, (B2, T2, M_DIM), jnp.float32)
    h2b = jax.random.normal(kh4, (B2, T2, M_DIM), jnp.float32)

    out_b = jax.block_until_ready(
        topo_attention(h1b, h2b, w_tp, V_tp, tile_n=128))
    ref_b = topo_attention_reference(h1b, h2b, w_tp, V_tp)
    assert out_b.shape == (B2, 2, T2), out_b.shape
    assert jnp.allclose(out_b, ref_b, atol=1e-4, rtol=1e-4), (
        float(jnp.max(jnp.abs(out_b - ref_b))))

    print("KERNEL_OK")
</pallas_src>

<mosaic_0001>
module attributes {stable_mosaic.version = 11 : i64} {
  func.func @topo_attention_kernel(%arg0: i32, %arg1: memref<16x32xf32, #tpu.memory_space<vmem>>, %arg2: memref<16x32xf32, #tpu.memory_space<vmem>>, %arg3: memref<16x32xf32, #tpu.memory_space<vmem>>, %arg4: memref<16x1xf32, #tpu.memory_space<vmem>>, %arg5: memref<2x16xf32, #tpu.memory_space<vmem>>) attributes {dimension_semantics = [#tpu.dimension_semantics<parallel>], iteration_bounds = array<i64: 1>, scalar_prefetch = 0 : i64, scratch_operands = 0 : i64, tpu.core_type = #tpu.core_type<tc>, window_params = [{transform_indices = @transform_0, window_bounds = array<i64: 16, 32>}, {transform_indices = @transform_1, window_bounds = array<i64: 16, 32>}, {pipeline_mode = #tpu.pipeline_mode<synchronous>, transform_indices = @transform_2, window_bounds = array<i64: 16, 32>}, {pipeline_mode = #tpu.pipeline_mode<synchronous>, transform_indices = @transform_3, window_bounds = array<i64: 16, 1>}, {transform_indices = @transform_4, window_bounds = array<i64: 2, 16>}]} {
    %c0 = arith.constant 0 : index
    %c0_0 = arith.constant 0 : index
    %0 = vector.load %arg3[%c0, %c0_0] : memref<16x32xf32, #tpu.memory_space<vmem>>, vector<16x32xf32>
    %c0_1 = arith.constant 0 : index
    %c0_2 = arith.constant 0 : index
    %1 = vector.load %arg4[%c0_1, %c0_2] : memref<16x1xf32, #tpu.memory_space<vmem>>, vector<16x1xf32>
    %c0_3 = arith.constant 0 : index
    %c0_4 = arith.constant 0 : index
    %2 = vector.load %arg1[%c0_3, %c0_4] : memref<16x32xf32, #tpu.memory_space<vmem>>, vector<16x32xf32>
    %cst = arith.constant dense<0.000000e+00> : vector<16x16xf32>
    %3 = tpu.matmul %0, %2, %cst {dimension_numbers = #tpu.dot_dimension_numbers<[1], [1], [0], [0], [0, 0, 1, 0], [], []>} : vector<16x32xf32>, vector<16x32xf32>, vector<16x16xf32> -> vector<16x16xf32>
    %4 = math.tanh %3 : vector<16x16xf32>
    %5 = vector.broadcast %1 : vector<16x1xf32> to vector<16x16xf32>
    %6 = arith.mulf %5, %4 : vector<16x16xf32>
    %cst_5 = arith.constant dense<0.000000e+00> : vector<16xf32>
    %7 = vector.multi_reduction <add>, %6, %cst_5 [0] : vector<16x16xf32> to vector<16xf32>
    %8 = vector.shape_cast %7 : vector<16xf32> to vector<1x16xf32>
    %c0_6 = arith.constant 0 : index
    %c0_7 = arith.constant 0 : index
    %9 = vector.load %arg2[%c0_6, %c0_7] : memref<16x32xf32, #tpu.memory_space<vmem>>, vector<16x32xf32>
    %cst_8 = arith.constant dense<0.000000e+00> : vector<16x16xf32>
    %10 = tpu.matmul %0, %9, %cst_8 {dimension_numbers = #tpu.dot_dimension_numbers<[1], [1], [0], [0], [0, 0, 1, 0], [], []>} : vector<16x32xf32>, vector<16x32xf32>, vector<16x16xf32> -> vector<16x16xf32>
    %11 = math.tanh %10 : vector<16x16xf32>
    %12 = vector.broadcast %1 : vector<16x1xf32> to vector<16x16xf32>
    %13 = arith.mulf %12, %11 : vector<16x16xf32>
    %cst_9 = arith.constant dense<0.000000e+00> : vector<16xf32>
    %14 = vector.multi_reduction <add>, %13, %cst_9 [0] : vector<16x16xf32> to vector<16xf32>
    %15 = vector.shape_cast %14 : vector<16xf32> to vector<1x16xf32>
    %16 = arith.subf %8, %15 : vector<1x16xf32>
    %17 = math.absf %16 : vector<1x16xf32>
    %cst_10 = arith.constant 0.000000e+00 : f32
    %18 = vector.broadcast %cst_10 : f32 to vector<1x16xf32>
    %19 = arith.subf %18, %17 : vector<1x16xf32>
    %20 = math.exp %19 : vector<1x16xf32>
    %cst_11 = arith.constant 1.000000e+00 : f32
    %21 = vector.broadcast %cst_11 : f32 to vector<1x16xf32>
    %22 = arith.addf %21, %20 : vector<1x16xf32>
    %cst_12 = arith.constant 1.000000e+00 : f32
    %23 = vector.broadcast %cst_12 : f32 to vector<1x16xf32>
    %24 = arith.divf %23, %22 : vector<1x16xf32>
    %cst_13 = arith.constant 0.000000e+00 : f32
    %25 = vector.broadcast %cst_13 : f32 to vector<1x16xf32>
    %26 = arith.cmpf oge, %16, %25 : vector<1x16xf32>
    %cst_14 = arith.constant 1.000000e+00 : f32
    %27 = vector.broadcast %cst_14 : f32 to vector<1x16xf32>
    %28 = arith.subf %27, %24 : vector<1x16xf32>
    %29 = arith.select %26, %24, %28 : vector<1x16xi1>, vector<1x16xf32>
    %c0_15 = arith.constant 0 : index
    %c0_16 = arith.constant 0 : index
    %30 = vector.load %arg5[%c0_15, %c0_16] : memref<2x16xf32, #tpu.memory_space<vmem>>, vector<1x16xf32>
    tpu.vector_store %arg5[%c0_15, %c0_16], %29 {strides = array<i32>} : memref<2x16xf32, #tpu.memory_space<vmem>>, vector<1x16xf32>,
    %cst_17 = arith.constant 1.000000e+00 : f32
    %31 = vector.broadcast %cst_17 : f32 to vector<1x16xf32>
    %32 = arith.subf %31, %29 : vector<1x16xf32>
    %c1 = arith.constant 1 : index
    %c0_18 = arith.constant 0 : index
    %33 = vector.load %arg5[%c1, %c0_18] : memref<2x16xf32, #tpu.memory_space<vmem>>, vector<1x16xf32>
    tpu.vector_store %arg5[%c1, %c0_18], %32 {strides = array<i32>} : memref<2x16xf32, #tpu.memory_space<vmem>>, vector<1x16xf32>,
    return
  }
  func.func @transform_0(%arg0: i32) -> (i32, i32) {
    %c0_i32 = arith.constant 0 : i32
    %c0_i32_0 = arith.constant 0 : i32
    return %arg0, %c0_i32 : i32, i32
  }
  func.func @transform_1(%arg0: i32) -> (i32, i32) {
    %c0_i32 = arith.constant 0 : i32
    %c0_i32_0 = arith.constant 0 : i32
    return %arg0, %c0_i32 : i32, i32
  }
  func.func @transform_2(%arg0: i32) -> (i32, i32) {
    %c0_i32 = arith.constant 0 : i32
    %c0_i32_0 = arith.constant 0 : i32
    %c0_i32_1 = arith.constant 0 : i32
    return %c0_i32, %c0_i32_0 : i32, i32
  }
  func.func @transform_3(%arg0: i32) -> (i32, i32) {
    %c0_i32 = arith.constant 0 : i32
    %c0_i32_0 = arith.constant 0 : i32
    %c0_i32_1 = arith.constant 0 : i32
    return %c0_i32, %c0_i32_0 : i32, i32
  }
  func.func @transform_4(%arg0: i32) -> (i32, i32) {
    %c0_i32 = arith.constant 0 : i32
    %c0_i32_0 = arith.constant 0 : i32
    return %c0_i32, %arg0 : i32, i32
  }
}

</mosaic_0001>

<llo_original>
// kernel: tpu_custom_call.1
$region0: #{tpu_custom_call.1}
  #allocation0 [shape = 'u32[]', space=smem, size = 0x4, offset = 0x4, fixed_abs, tag = 'smem constant byte address 0x4 - core index']
  #allocation1 [shape = 'u32[144,128]{1,0:T(1,128)}', space=vmem, size = 0x12000, scoped, tag = 'internal scratch']
  %s0 = inlined_call_operand.vmem [shape: f32[16,32], index: 0, kind: input, shape index: {}]
  %s1 = inlined_call_operand.hbm [shape: f32[16,32], index: 1, kind: input, shape index: {}]
  %s2 = inlined_call_operand.hbm [shape: f32[16,32], index: 2, kind: input, shape index: {}]
  %s3 = inlined_call_operand.vmem [shape: f32[16,1], index: 3, kind: input, shape index: {}]
  %s4 = inlined_call_operand.hbm [shape: f32[2,16], index: 4, kind: output, shape index: {}]
  %s5 = sld [smem:[#allocation0]]
  $region34: #{tpu_custom_call.1} parent=0
    _
  %s7 = ssub.s32 1, %s5
  %s8 = scalar_select 0, %s7, %s5
  $region1: #{tpu_custom_call.1} parent=0
    #allocation2 [shape = 'u8[8192]{0}', space=vmem, size = 0x2000, scoped, tag = 'input window, operand 1, single buffered']
    #allocation3 [shape = 's32[1]{0}', space=sflag, size = 0x4, scoped, tag = 'scoped memory for tpu_custom_call.1']
    #allocation4 [shape = 's32[1]{0}', space=sflag, size = 0x4, scoped, tag = 'scoped memory for tpu_custom_call.1']
    #allocation5 [shape = 'u8[8192]{0}', space=vmem, size = 0x2000, scoped, tag = 'input window, operand 2, single buffered']
    #allocation6 [shape = 's32[1]{0}', space=sflag, size = 0x4, scoped, tag = 'scoped memory for tpu_custom_call.1']
    #allocation7 [shape = 'u8[1024]{0}', space=vmem, size = 0x400, scoped, tag = 'output window, operand 0, single buffered']
    %9 = vsyncpa [#allocation3], 0
    %10 = vsyncpa [#allocation6], 0
    %11 = vsyncpa [#allocation4], 0
    // Predicated region
    $region2: #{tpu_custom_call.1} parent=1 // pred_check
      _
    $region3: #{tpu_custom_call.1} parent=1 // pred_check_branch
      %13 = sbr.rel (0) target = $region5
    $region4: #{tpu_custom_call.1} parent=1 // pred_region
      _
    $region5: #{tpu_custom_call.1} parent=1 // pred_fallthru
      _
    // Predicated region
    $region6: #{tpu_custom_call.1} parent=1 // pred_check
      _
    $region7: #{tpu_custom_call.1} parent=1 // pred_check_branch
      %15 = sbr.rel (0) target = $region9
    $region8: #{tpu_custom_call.1} parent=1 // pred_region
      %s17 = ssub.s32 256, 256
      %18 = vsyncadd [#allocation3], %s17
      %s19 = sshll.u32 [#allocation2], 4
      %s20 = int_to_ptr.vmem [resolvable:$true] %s19
      %25 = dma.hbm_to_vmem [thread:$0]  %s1, 256, %s20, [#allocation3], 128, 128, 8
    $region9: #{tpu_custom_call.1} parent=1 // pred_fallthru
      _
    // Predicated region
    $region10: #{tpu_custom_call.1} parent=1 // pred_check
      _
    $region11: #{tpu_custom_call.1} parent=1 // pred_check_branch
      %27 = sbr.rel (0) target = $region13
    $region12: #{tpu_custom_call.1} parent=1 // pred_region
      %s29 = ssub.s32 256, 256
      %30 = vsyncadd [#allocation6], %s29
      %s31 = sshll.u32 [#allocation5], 4
      %s32 = int_to_ptr.vmem [resolvable:$true] %s31
      %37 = dma.hbm_to_vmem [thread:$0]  %s2, 256, %s32, [#allocation6], 128, 128, 8
    $region13: #{tpu_custom_call.1} parent=1 // pred_fallthru
      _
    // Predicated region
    $region14: #{tpu_custom_call.1} parent=1 // pred_check
      _
    $region15: #{tpu_custom_call.1} parent=1 // pred_check_branch
      %39 = sbr.rel (0) target = $region17
    $region16: #{tpu_custom_call.1} parent=1 // pred_region
      _
    $region17: #{tpu_custom_call.1} parent=1 // pred_fallthru
      _
    // Predicated region
    $region18: #{tpu_custom_call.1} parent=1 // pred_check
      _
    $region19: #{tpu_custom_call.1} parent=1 // pred_check_branch
      %41 = sbr.rel (0) target = $region21
    $region20: #{tpu_custom_call.1} parent=1 // pred_region
      %42 = dma.done [#allocation3], 256
    $region21: #{tpu_custom_call.1} parent=1 // pred_fallthru
      _
    // Predicated region
    $region22: #{tpu_custom_call.1} parent=1 // pred_check
      _
    $region23: #{tpu_custom_call.1} parent=1 // pred_check_branch
      %44 = sbr.rel (0) target = $region25
    $region24: #{tpu_custom_call.1} parent=1 // pred_region
      %45 = dma.done [#allocation6], 256
    $region25: #{tpu_custom_call.1} parent=1 // pred_fallthru
      _
    %v46 = vld [vmem:[#allocation5] sm:$0xff]
    %v47 = vld [vmem:[#allocation5 + $0x8] sm:$0xff]
    %v48 = vld [vmem:[%s3] sm:$0xff]
    %v49 = vld [vmem:[%s3 + $0x8] sm:$0xff]
    %v50 = vld [vmem:[%s0] sm:$0xff]
    %v51 = vld [vmem:[%s0 + $0x8] sm:$0xff]
    %vm52 = vcmask 261120
    %v54 = vsel %vm52, %v46, 0
    %v57 = vsel %vm52, %v47, 0
    %v60 = vsel %vm52, %v50, 0
    %v63 = vsel %vm52, %v51, 0
    %65 = vmatprep.subr.mxu0 0.0
    %66 = vmatpush1.xpose.msra.mxu0 0.0
    %67 = vmatprep.subr.mxu0 0.0
    %68 = vmatpush1.xpose.msra.mxu0 0.0
    %69 = vmatprep.subr.mxu0 0.0
    %70 = vmatpush1.xpose.msra.mxu0 0.0
    %71 = vmatprep.subr.mxu0 0.0
    %72 = vmatpush1.xpose.msra.mxu0 0.0
    %73 = vmatprep.subr.mxu0 0.0
    %74 = vmatpush1.xpose.msra.mxu0 0.0
    %75 = vmatprep.subr.mxu0 0.0
    %76 = vmatpush1.xpose.msra.mxu0 0.0
    %77 = vmatprep.subr.mxu0 0.0
    %78 = vmatpush1.xpose.msra.mxu0 0.0
    %79 = vmatprep.subr.mxu0 0.0
    %80 = vmatpush1.xpose.msra.mxu0 0.0
    %81 = vmatprep.subr.mxu0 0.0
    %82 = vmatpush1.xpose.msra.mxu0 0.0
    %83 = vmatprep.subr.mxu0 0.0
    %84 = vmatpush1.xpose.msra.mxu0 0.0
    %85 = vmatprep.subr.mxu0 0.0
    %86 = vmatpush1.xpose.msra.mxu0 0.0
    %87 = vmatprep.subr.mxu0 0.0
    %88 = vmatpush1.xpose.msra.mxu0 0.0
    %89 = vmatprep.subr.mxu0 0.0
    %90 = vmatpush1.xpose.msra.mxu0 0.0
    %91 = vmatprep.subr.mxu0 0.0
    %92 = vmatpush1.xpose.msra.mxu0 0.0
    %93 = vmatprep.subr.mxu0 0.0
    %94 = vmatpush1.xpose.msra.mxu0 %v63
    %95 = vmatprep.subr.mxu0 0.0
    %96 = vmatpush1.xpose.msra.mxu0 %v60
    %97 = vmatprep.subr.mxu0 0.0
    %98 = vmatpush2.xpose.msra.mxu0 0.0
    %99 = vmatprep.subr.mxu0 0.0
    %100 = vmatpush2.xpose.msra.mxu0 0.0
    %101 = vmatprep.subr.mxu0 0.0
    %102 = vmatpush2.xpose.msra.mxu0 0.0
    %103 = vmatprep.subr.mxu0 0.0
    %104 = vmatpush2.xpose.msra.mxu0 0.0
    %105 = vmatprep.subr.mxu0 0.0
    %106 = vmatpush2.xpose.msra.mxu0 0.0
    %107 = vmatprep.subr.mxu0 0.0
    %108 = vmatpush2.xpose.msra.mxu0 0.0
    %109 = vmatprep.subr.mxu0 0.0
    %110 = vmatpush2.xpose.msra.mxu0 0.0
    %111 = vmatprep.subr.mxu0 0.0
    %112 = vmatpush2.xpose.msra.mxu0 0.0
    %113 = vmatprep.subr.mxu0 0.0
    %114 = vmatpush2.xpose.msra.mxu0 0.0
    %115 = vmatprep.subr.mxu0 0.0
    %116 = vmatpush2.xpose.msra.mxu0 0.0
    %117 = vmatprep.subr.mxu0 0.0
    %118 = vmatpush2.xpose.msra.mxu0 0.0
    %119 = vmatprep.subr.mxu0 0.0
    %120 = vmatpush2.xpose.msra.mxu0 0.0
    %121 = vmatprep.subr.mxu0 0.0
    %122 = vmatpush2.xpose.msra.mxu0 0.0
    %123 = vmatprep.subr.mxu0 0.0
    %124 = vmatpush2.xpose.msra.mxu0 0.0
    %125 = vmatprep.subr.mxu0 0.0
    %126 = vmatpush2.xpose.msra.mxu0 0.0
    %127 = vmatprep.subr.mxu0 0.0
    %128 = vmatpush2.xpose.msra.mxu0 0.0
    %129 = vmatprep.mubr.f32.mxu0 0.0
    %130 = vmatmul.mubr.f32.gmra.mxu0 %v54
    %v131 = vpop.f32.mrf.mxu0
    %v132 = vadd.f32 0.0, %v131
    %v133 = vpop.f32.mrf.mxu0
    %134 = vmatprep.mubr.f32.mxu0 0.0
    %135 = vmatmul.mubr.f32.gmra.mxu0 %v57
    %v136 = vpop.f32.mrf.mxu0
    %v137 = vadd.f32 0.0, %v136
    %v138 = vpop.f32.mrf.mxu0
    %139 = vdwg.mxu0
    %v140 = vtanh.pop %v132
    %v141 = vtanh.pop %v137
    %143 = vset.pattern.permute.xlu0 0
    %144 = vperm.xlu0 %143, %v48
    %v145 = vpop.permute.xlu0 %144
    %148 = vset.pattern.permute.xlu0 0
    %149 = vperm.xlu0 %148, %v49
    %v150 = vpop.permute.xlu0 %149
    %v152 = vmul.f32 %v145, %v140
    %v153 = vmul.f32 %v150, %v141
    %vm154 = vcmask 130048
    %v155 = vsel %vm154, %v152, 0.0
    %v156 = vsel %vm154, %v153, 0.0
    %v157 = vadd.f32 %v155, %v156
    %v158 = vrot.slane %v157, 4
    %v159 = vadd.f32 %v157, %v158
    %v160 = vrot.slane %v159, 2
    %v161 = vadd.f32 %v159, %v160
    %v162 = vrot.slane %v161, 1
    %v163 = vadd.f32 %v161, %v162
    %v164 = vld [vmem:[#allocation2] sm:$0xff]
    %v165 = vld [vmem:[#allocation2 + $0x8] sm:$0xff]
    %v167 = vsel %vm52, %v164, 0
    %v170 = vsel %vm52, %v165, 0
    %172 = vmatprep.subr.mxu0 0.0
    %173 = vmatpush1.xpose.msra.mxu0 0.0
    %174 = vmatprep.subr.mxu0 0.0
    %175 = vmatpush1.xpose.msra.mxu0 0.0
    %176 = vmatprep.subr.mxu0 0.0
    %177 = vmatpush1.xpose.msra.mxu0 0.0
    %178 = vmatprep.subr.mxu0 0.0
    %179 = vmatpush1.xpose.msra.mxu0 0.0
    %180 = vmatprep.subr.mxu0 0.0
    %181 = vmatpush1.xpose.msra.mxu0 0.0
    %182 = vmatprep.subr.mxu0 0.0
    %183 = vmatpush1.xpose.msra.mxu0 0.0
    %184 = vmatprep.subr.mxu0 0.0
    %185 = vmatpush1.xpose.msra.mxu0 0.0
    %186 = vmatprep.subr.mxu0 0.0
    %187 = vmatpush1.xpose.msra.mxu0 0.0
    %188 = vmatprep.subr.mxu0 0.0
    %189 = vmatpush1.xpose.msra.mxu0 0.0
    %190 = vmatprep.subr.mxu0 0.0
    %191 = vmatpush1.xpose.msra.mxu0 0.0
    %192 = vmatprep.subr.mxu0 0.0
    %193 = vmatpush1.xpose.msra.mxu0 0.0
    %194 = vmatprep.subr.mxu0 0.0
    %195 = vmatpush1.xpose.msra.mxu0 0.0
    %196 = vmatprep.subr.mxu0 0.0
    %197 = vmatpush1.xpose.msra.mxu0 0.0
    %198 = vmatprep.subr.mxu0 0.0
    %199 = vmatpush1.xpose.msra.mxu0 0.0
    %200 = vmatprep.subr.mxu0 0.0
    %201 = vmatpush1.xpose.msra.mxu0 %v170
    %202 = vmatprep.subr.mxu0 0.0
    %203 = vmatpush1.xpose.msra.mxu0 %v167
    %204 = vmatprep.subr.mxu0 0.0
    %205 = vmatpush2.xpose.msra.mxu0 0.0
    %206 = vmatprep.subr.mxu0 0.0
    %207 = vmatpush2.xpose.msra.mxu0 0.0
    %208 = vmatprep.subr.mxu0 0.0
    %209 = vmatpush2.xpose.msra.mxu0 0.0
    %210 = vmatprep.subr.mxu0 0.0
    %211 = vmatpush2.xpose.msra.mxu0 0.0
    %212 = vmatprep.subr.mxu0 0.0
    %213 = vmatpush2.xpose.msra.mxu0 0.0
    %214 = vmatprep.subr.mxu0 0.0
    %215 = vmatpush2.xpose.msra.mxu0 0.0
    %216 = vmatprep.subr.mxu0 0.0
    %217 = vmatpush2.xpose.msra.mxu0 0.0
    %218 = vmatprep.subr.mxu0 0.0
    %219 = vmatpush2.xpose.msra.mxu0 0.0
    %220 = vmatprep.subr.mxu0 0.0
    %221 = vmatpush2.xpose.msra.mxu0 0.0
    %222 = vmatprep.subr.mxu0 0.0
    %223 = vmatpush2.xpose.msra.mxu0 0.0
    %224 = vmatprep.subr.mxu0 0.0
    %225 = vmatpush2.xpose.msra.mxu0 0.0
    %226 = vmatprep.subr.mxu0 0.0
    %227 = vmatpush2.xpose.msra.mxu0 0.0
    %228 = vmatprep.subr.mxu0 0.0
    %229 = vmatpush2.xpose.msra.mxu0 0.0
    %230 = vmatprep.subr.mxu0 0.0
    %231 = vmatpush2.xpose.msra.mxu0 0.0
    %232 = vmatprep.subr.mxu0 0.0
    %233 = vmatpush2.xpose.msra.mxu0 0.0
    %234 = vmatprep.subr.mxu0 0.0
    %235 = vmatpush2.xpose.msra.mxu0 0.0
    %236 = vmatprep.mubr.f32.mxu0 0.0
    %237 = vmatmul.mubr.f32.gmra.mxu0 %v54
    %v238 = vpop.f32.mrf.mxu0
    %v239 = vadd.f32 0.0, %v238
    %v240 = vpop.f32.mrf.mxu0
    %241 = vmatprep.mubr.f32.mxu0 0.0
    %242 = vmatmul.mubr.f32.gmra.mxu0 %v57
    %v243 = vpop.f32.mrf.mxu0
    %v244 = vadd.f32 0.0, %v243
    %v245 = vpop.f32.mrf.mxu0
    %246 = vdwg.mxu0
    %v247 = vtanh.pop %v239
    %v248 = vtanh.pop %v244
    %v249 = vmul.f32 %v145, %v247
    %v250 = vmul.f32 %v150, %v248
    %v251 = vsel %vm154, %v249, 0.0
    %v252 = vsel %vm154, %v250, 0.0
    %v253 = vadd.f32 %v251, %v252
    %v254 = vrot.slane %v253, 4
    %v255 = vadd.f32 %v253, %v254
    %v256 = vrot.slane %v255, 2
    %v257 = vadd.f32 %v255, %v256
    %v258 = vrot.slane %v257, 1
    %v259 = vadd.f32 %v257, %v258
    %v260 = vsub.f32 %v163, %v259
    %v261 = vand.u32 2147483647, %v260
    %v262 = vsub.f32 0.0, %v261
    %v263 = vmul.f32 %v262, 1.442695
    %v264 = vpow.pop %v263
    %v265 = vadd.f32 %v264, 1.0
    %v266 = vrcp.pop %v265
    %v267 = vmul.f32 1.0, %v266
    %vm268 = vcmp.ge.f32.partialorder %v260, 0.0
    %v269 = vsub.f32 1.0, %v267
    %v270 = vsel %vm268, %v267, %v269
    %vm271 = vcmask 122880
    %272 = vst.msk [vmem:[#allocation7] sm:$0x1] %vm271, %v270
    %v273 = vsub.f32 1.0, %v270
    %274 = vst.msk [vmem:[#allocation7 + $0x1] sm:$0x1] %vm271, %v273
    // Predicated region
    $region26: #{tpu_custom_call.1} parent=1 // pred_check
      _
    $region27: #{tpu_custom_call.1} parent=1 // pred_check_branch
      %276 = sbr.rel (0) target = $region29
    $region28: #{tpu_custom_call.1} parent=1 // pred_region
      %s278 = ssub.s32 32, 32
      %279 = vsyncadd [#allocation4], %s278
      %s281 = sshll.u32 [#allocation7], 4
      %s282 = int_to_ptr.vmem [resolvable:$true] %s281
      %284 = dma.vmem_to_hbm [thread:$0]  %s282, 32, %s4, [#allocation4]
    $region29: #{tpu_custom_call.1} parent=1 // pred_fallthru
      _
    // Predicated region
    $region30: #{tpu_custom_call.1} parent=1 // pred_check
      _
    $region31: #{tpu_custom_call.1} parent=1 // pred_check_branch
      %286 = sbr.rel (0) target = $region33
    $region32: #{tpu_custom_call.1} parent=1 // pred_region
      %287 = dma.done [#allocation4], 32
    $region33: #{tpu_custom_call.1} parent=1 // pred_fallthru
      _
    %288 = vsyncpa [#allocation3], 1
    %289 = vsyncpa [#allocation6], 1
    %290 = vsyncpa [#allocation4], 1

</llo_original>
